<compile_context>
chip_gen: v6e
topology: v6e:2x2x1
jax: 0.10.0
libtpu: 0.0.40
codegen_flags: <defaults>
</compile_context>

<pallas_src>
import functools

import jax
import jax.numpy as jnp
from jax.experimental import pallas as pl
from jax.experimental.pallas import tpu as pltpu


def _round_up(n, m):
    return ((n + m - 1) // m) * m


def _cdiv(a, b):
    return -(-a // b)


# ----------------------------------------------------------------------------
# Kernel
# ----------------------------------------------------------------------------
def _encoder_kernel(x_ref, w1_ref, b1_ref, wh_ref, bh_ref, out_ref, *, L):
    # x_ref : (TB, D_in) f32  (cast to bf16 in-kernel; hidden under the MXU)
    # w1_ref: (D_in, H)  bf16          b1_ref: (1, H)  f32
    # wh_ref: (H, LP)    bf16 fused [mean | logp | zero-pad] head weights
    # bh_ref: (1, LP)    f32  fused biases
    # out_ref:(TB, LP)   f32 lane-dense slab:
    #   lanes [0, L)   -> mean,  lanes [L, 2L) -> logp
    #   lane  2L       -> ||mean||_2 per row,  lane 2L+1 -> ||logp||_2 per row
    x = x_ref[...].astype(jnp.bfloat16)

    # hidden layer: Linear + tanh (f32 accumulate, f32 activation math)
    h = jnp.tanh(
        jnp.dot(x, w1_ref[...], preferred_element_type=jnp.float32)
        + b1_ref[...]
    )                                                            # (TB, H) f32

    # fused mean/logp heads in a single MXU matmul
    ml = jnp.dot(h.astype(wh_ref.dtype), wh_ref[...],
                 preferred_element_type=jnp.float32) + bh_ref[...]   # (TB, LP)

    # lane-dense full store of the head outputs (padded lanes are zero)
    out_ref[...] = ml.astype(out_ref.dtype)

    # per-row L2 norms of the two halves (torch.norm(., dim=-1)); masked sums
    # over the lane iota (no value-slices at non-128 lane boundaries), then a
    # single narrow 2-lane store into the spare padded lanes.
    lane = jax.lax.broadcasted_iota(jnp.int32, ml.shape, 1)
    sq = ml * ml
    m_sq = jnp.sum(jnp.where(lane < L, sq, 0.0), axis=-1, keepdims=True)
    l_sq = jnp.sum(jnp.where((lane >= L) & (lane < 2 * L), sq, 0.0),
                   axis=-1, keepdims=True)
    norms = jnp.concatenate([jnp.sqrt(m_sq), jnp.sqrt(l_sq)], axis=-1)  # (TB,2)
    out_ref[:, 2 * L:2 * L + 2] = norms.astype(out_ref.dtype)


# ----------------------------------------------------------------------------
# Tiling / VMEM budgeting
# ----------------------------------------------------------------------------
def _select_tiling(B, D_in, H, LP):
    """Pick (TB, num_tiles, B_pad, vmem_limit_bytes) from the real footprint."""
    try:
        vmem_cap = int(pltpu.get_tpu_info().vmem_capacity_bytes)
    except Exception:  # pragma: no cover - fall back to the v7x floor
        vmem_cap = 64 * 1024 * 1024
    budget = int(vmem_cap * 0.6)

    # resident (single-buffered) weights/biases
    resident = D_in * H * 2 + H * 4 + H * LP * 2 + LP * 4
    # per-row VMEM: double-buffered x(f32)/out(f32) tiles + kernel temporaries
    per_row = (2 * D_in * 4 + 2 * LP * 4       # pipelined I/O tiles (2 bufs)
               + D_in * 2                      # in-kernel bf16 cast of x
               + H * 4 + H * 2                 # h (f32) + h (bf16)
               + 3 * LP * 4)                   # ml / sq / where temporaries
    max_rows = (budget - resident) // per_row if budget > resident else 16
    max_rows = max(16, min(2048, (max_rows // 16) * 16))

    num_tiles = max(1, _cdiv(B, max_rows))
    # v7x has 2 TensorCores: give the 'parallel' batch axis >=2 steps when
    # there is enough work to split (tiny batches stay single-step).
    if num_tiles == 1 and B >= 512:
        num_tiles = 2

    rows = _cdiv(B, num_tiles)
    TB = _round_up(rows, 16)                   # bf16 sublane packing
    for align in (256, 128):                   # MXU-friendly M only if cheap
        cand = _round_up(rows, align)
        if cand <= max_rows and cand * num_tiles - B <= max(B // 8, 16):
            TB = cand
            break
    B_pad = TB * num_tiles

    vmem_needed = resident + TB * per_row
    vmem_limit = min(vmem_cap, max(vmem_needed * 5 // 4 + (1 << 20), 16 << 20))
    return TB, num_tiles, B_pad, vmem_limit


def _resident_spec(shape):
    """Single-buffered BlockSpec for blocks that never change across the grid."""
    idx = lambda i: (0,) * len(shape)
    try:
        return pl.BlockSpec(shape, idx, pipeline_mode=pl.Buffered(1))
    except TypeError:  # older jax without pipeline_mode: default buffering
        return pl.BlockSpec(shape, idx)


# ----------------------------------------------------------------------------
# Forward wrapper
# ----------------------------------------------------------------------------
@functools.partial(jax.jit, static_argnames=("latent",))
def encoder_forward_pallas(x, w1_bf, b1, wh_bf, bh, *, latent):
    """x: (B, D_in) f32. Returns (mean, logp, mean_norm_avg, logp_norm_avg)."""
    B, D_in = x.shape
    H = w1_bf.shape[1]
    LP = wh_bf.shape[1]
    L = latent
    assert LP % 128 == 0 and LP >= 2 * L + 2

    TB, num_tiles, B_pad, vmem_limit = _select_tiling(B, D_in, H, LP)

    x_in = x if B_pad == B else jnp.pad(x, ((0, B_pad - B), (0, 0)))

    cost = pl.CostEstimate(
        flops=2 * B_pad * (D_in * H + H * LP),
        transcendentals=B_pad * (H + 2),
        bytes_accessed=(x_in.size * 4 + w1_bf.size * 2 + wh_bf.size * 2
                        + b1.size * 4 + bh.size * 4 + B_pad * LP * 4),
    )

    slab = pl.pallas_call(
        functools.partial(_encoder_kernel, L=L),
        out_shape=jax.ShapeDtypeStruct((B_pad, LP), jnp.float32),
        grid=(num_tiles,),
        in_specs=[
            pl.BlockSpec((TB, D_in), lambda i: (i, 0)),   # x: tiled over batch
            _resident_spec((D_in, H)),                    # weights resident,
            _resident_spec((1, H)),                       # single-buffered
            _resident_spec((H, LP)),
            _resident_spec((1, LP)),
        ],
        out_specs=pl.BlockSpec((TB, LP), lambda i: (i, 0)),
        compiler_params=pltpu.CompilerParams(
            dimension_semantics=("parallel",),
            vmem_limit_bytes=int(vmem_limit),
        ),
        cost_estimate=cost,
    )(x_in, w1_bf, b1, wh_bf, bh)

    # These slices live inside the jit region, so XLA fuses them with the
    # consumer instead of doing standalone HBM copies.
    mean = slab[:B, :L]
    logp = slab[:B, L:2 * L]
    mean_norm_avg = jnp.mean(slab[:B, 2 * L])
    logp_norm_avg = jnp.mean(slab[:B, 2 * L + 1])
    return mean, logp, mean_norm_avg, logp_norm_avg


# ----------------------------------------------------------------------------
# Module wrapper mirroring Encoders/encoder.py::encoder
# ----------------------------------------------------------------------------
class EncoderPallas:
    """Mirrors Encoders/encoder.py::encoder for argdict['encoder'] == 'linear'.

    The inner Linear encoder is Linear(D_in, H) -> tanh -> two Linear(H, L)
    heads (mean, logp). encoder.forward additionally logs the batch-averaged
    L2 norm of mean and logp; here those values stay on device (no per-step
    host sync) and are materialized once via logged_norms().
    """
    # TODO(synk): 'gru' and 'cnn' inner encoders are not implemented here;
    # only the 'linear' dispatch branch is covered.

    def __init__(self, argdict, key):
        assert argdict['encoder'].lower() == 'linear'
        self.argdict = argdict
        d_in = argdict['input_size']
        hidden = argdict['hidden_size']
        latent = argdict['latent_size']
        self.latent = latent

        k1, k2, k3 = jax.random.split(key, 3)
        scale = 0.05
        # f32 master parameters, stored (in, out) so the kernel computes x@W+b.
        w1 = scale * jax.random.normal(k1, (d_in, hidden), jnp.float32)
        b1 = jnp.zeros((1, hidden), jnp.float32)
        wm = scale * jax.random.normal(k2, (hidden, latent), jnp.float32)
        bm = jnp.zeros((1, latent), jnp.float32)
        wl = scale * jax.random.normal(k3, (hidden, latent), jnp.float32)
        bl = jnp.zeros((1, latent), jnp.float32)
        self.params_f32 = (w1, b1, wm, bm, wl, bl)

        # Fused + lane-padded kernel parameters: heads weight [wm | wl | 0-pad]
        # -> (hidden, LP), LP a multiple of 128 (two spare lanes carry norms).
        LP = max(128, _round_up(2 * latent + 2, 128))
        wh = jnp.zeros((hidden, LP), jnp.float32)
        wh = wh.at[:, :latent].set(wm).at[:, latent:2 * latent].set(wl)
        bh = jnp.zeros((1, LP), jnp.float32)
        bh = bh.at[:, :latent].set(bm[0]).at[:, latent:2 * latent].set(bl[0])

        self.kernel_params = (
            w1.astype(jnp.bfloat16),   # MXU inputs in bf16 (f32 accumulate)
            b1,
            wh.astype(jnp.bfloat16),
            bh,
        )
        # Device scalars appended per forward() call (matches the torch module,
        # but without a per-step host sync).  Unbounded by design, like torch.
        self.means = []
        self.logps = []

    def forward(self, x):
        w1_bf, b1, wh_bf, bh = self.kernel_params
        mean, logp, mnorm, lnorm = encoder_forward_pallas(
            x, w1_bf, b1, wh_bf, bh, latent=self.latent)
        self.means.append(mnorm)
        self.logps.append(lnorm)
        return mean, logp

    def logged_norms(self):
        means = [float(v) for v in jax.device_get(self.means)]
        logps = [float(v) for v in jax.device_get(self.logps)]
        return means, logps


# ----------------------------------------------------------------------------
# Plain-JAX reference (matches the kernel's bf16-input / f32-accumulate math)
# ----------------------------------------------------------------------------
def _reference_forward(x, params_f32):
    w1, b1, wm, bm, wl, bl = params_f32
    cast = lambda a: a.astype(jnp.bfloat16).astype(jnp.float32)
    hi = jax.lax.Precision.HIGHEST
    h = jnp.tanh(jnp.dot(cast(x), cast(w1), precision=hi) + b1)
    h = cast(h)
    mean = jnp.dot(h, cast(wm), precision=hi) + bm
    logp = jnp.dot(h, cast(wl), precision=hi) + bl
    return mean, logp


if __name__ == "__main__":
    key = jax.random.PRNGKey(0)
    k_x, k_p = jax.random.split(key)

    argdict = {
        'encoder': 'linear',
        'input_size': 32,
        'hidden_size': 64,
        'latent_size': 32,
    }
    B = 8
    x = jax.random.normal(k_x, (B, argdict['input_size']), jnp.float32)

    enc = EncoderPallas(argdict, k_p)
    mean, logp = enc.forward(x)
    jax.block_until_ready((mean, logp))

    # correctness vs plain-JAX reference
    mean_ref, logp_ref = _reference_forward(x, enc.params_f32)
    assert mean.shape == (B, argdict['latent_size'])
    assert logp.shape == (B, argdict['latent_size'])
    assert jnp.allclose(mean, mean_ref, atol=2e-3, rtol=2e-2)
    assert jnp.allclose(logp, logp_ref, atol=2e-3, rtol=2e-2)

    means_log, logps_log = enc.logged_norms()
    mnorm_ref = float(jnp.mean(jnp.linalg.norm(mean_ref, axis=-1)))
    lnorm_ref = float(jnp.mean(jnp.linalg.norm(logp_ref, axis=-1)))
    assert abs(means_log[0] - mnorm_ref) < 1e-2
    assert abs(logps_log[0] - lnorm_ref) < 1e-2

    print("KERNEL_OK")
</pallas_src>

<mosaic_0001>
module attributes {stable_mosaic.version = 11 : i64} {
  func.func @_encoder_kernel(%arg0: i32, %arg1: memref<16x32xf32, #tpu.memory_space<vmem>>, %arg2: memref<32x64xbf16, #tpu.memory_space<vmem>>, %arg3: memref<1x64xf32, #tpu.memory_space<vmem>>, %arg4: memref<64x128xbf16, #tpu.memory_space<vmem>>, %arg5: memref<1x128xf32, #tpu.memory_space<vmem>>, %arg6: memref<16x128xf32, #tpu.memory_space<vmem>>) attributes {dimension_semantics = [#tpu.dimension_semantics<parallel>], iteration_bounds = array<i64: 1>, scalar_prefetch = 0 : i64, scratch_operands = 0 : i64, tpu.core_type = #tpu.core_type<tc>, window_params = [{transform_indices = @transform_0, window_bounds = array<i64: 16, 32>}, {pipeline_mode = #tpu.pipeline_mode<synchronous>, transform_indices = @transform_1, window_bounds = array<i64: 32, 64>}, {pipeline_mode = #tpu.pipeline_mode<synchronous>, transform_indices = @transform_2, window_bounds = array<i64: 1, 64>}, {pipeline_mode = #tpu.pipeline_mode<synchronous>, transform_indices = @transform_3, window_bounds = array<i64: 64, 128>}, {pipeline_mode = #tpu.pipeline_mode<synchronous>, transform_indices = @transform_4, window_bounds = array<i64: 1, 128>}, {transform_indices = @transform_5, window_bounds = array<i64: 16, 128>}]} {
    %c0 = arith.constant 0 : index
    %c0_0 = arith.constant 0 : index
    %0 = vector.load %arg1[%c0, %c0_0] : memref<16x32xf32, #tpu.memory_space<vmem>>, vector<16x32xf32>
    %1 = arith.truncf %0 : vector<16x32xf32> to vector<16x32xbf16>
    %c0_1 = arith.constant 0 : index
    %c0_2 = arith.constant 0 : index
    %2 = vector.load %arg2[%c0_1, %c0_2] : memref<32x64xbf16, #tpu.memory_space<vmem>>, vector<32x64xbf16>
    %cst = arith.constant dense<0.000000e+00> : vector<16x64xf32>
    %3 = tpu.matmul %1, %2, %cst {dimension_numbers = #tpu.dot_dimension_numbers<[1], [0], [0], [1], [0, 0, 1, 1], [], []>} : vector<16x32xbf16>, vector<32x64xbf16>, vector<16x64xf32> -> vector<16x64xf32>
    %c0_3 = arith.constant 0 : index
    %c0_4 = arith.constant 0 : index
    %4 = vector.load %arg3[%c0_3, %c0_4] : memref<1x64xf32, #tpu.memory_space<vmem>>, vector<1x64xf32>
    %5 = vector.broadcast %4 : vector<1x64xf32> to vector<16x64xf32>
    %6 = arith.addf %3, %5 : vector<16x64xf32>
    %7 = math.tanh %6 : vector<16x64xf32>
    %8 = arith.truncf %7 : vector<16x64xf32> to vector<16x64xbf16>
    %c0_5 = arith.constant 0 : index
    %c0_6 = arith.constant 0 : index
    %9 = vector.load %arg4[%c0_5, %c0_6] : memref<64x128xbf16, #tpu.memory_space<vmem>>, vector<64x128xbf16>
    %cst_7 = arith.constant dense<0.000000e+00> : vector<16x128xf32>
    %10 = tpu.matmul %8, %9, %cst_7 {dimension_numbers = #tpu.dot_dimension_numbers<[1], [0], [0], [1], [0, 0, 1, 1], [], []>} : vector<16x64xbf16>, vector<64x128xbf16>, vector<16x128xf32> -> vector<16x128xf32>
    %c0_8 = arith.constant 0 : index
    %c0_9 = arith.constant 0 : index
    %11 = vector.load %arg5[%c0_8, %c0_9] : memref<1x128xf32, #tpu.memory_space<vmem>>, vector<1x128xf32>
    %12 = vector.broadcast %11 : vector<1x128xf32> to vector<16x128xf32>
    %13 = arith.addf %10, %12 : vector<16x128xf32>
    %c0_10 = arith.constant 0 : index
    %c0_11 = arith.constant 0 : index
    %14 = vector.load %arg6[%c0_10, %c0_11] : memref<16x128xf32, #tpu.memory_space<vmem>>, vector<16x128xf32>
    tpu.vector_store %arg6[%c0_10, %c0_11], %13 {strides = array<i32>} : memref<16x128xf32, #tpu.memory_space<vmem>>, vector<16x128xf32>,
    %15 = tpu.iota {dimensions = array<i32: 1>} : vector<16x128xi32>
    %16 = arith.mulf %13, %13 : vector<16x128xf32>
    %c32_i32 = arith.constant 32 : i32
    %17 = vector.broadcast %c32_i32 : i32 to vector<16x128xi32>
    %18 = arith.cmpi slt, %15, %17 : vector<16x128xi32>
    %cst_12 = arith.constant 0.000000e+00 : f32
    %19 = vector.broadcast %cst_12 : f32 to vector<16x128xf32>
    %20 = arith.select %18, %16, %19 : vector<16x128xi1>, vector<16x128xf32>
    %cst_13 = arith.constant dense<0.000000e+00> : vector<16xf32>
    %21 = vector.multi_reduction <add>, %20, %cst_13 [1] : vector<16x128xf32> to vector<16xf32>
    %22 = vector.shape_cast %21 : vector<16xf32> to vector<16x1xf32>
    %c32_i32_14 = arith.constant 32 : i32
    %23 = vector.broadcast %c32_i32_14 : i32 to vector<16x128xi32>
    %24 = arith.cmpi sge, %15, %23 : vector<16x128xi32>
    %c64_i32 = arith.constant 64 : i32
    %25 = vector.broadcast %c64_i32 : i32 to vector<16x128xi32>
    %26 = arith.cmpi slt, %15, %25 : vector<16x128xi32>
    %27 = arith.andi %24, %26 : vector<16x128xi1>
    %cst_15 = arith.constant 0.000000e+00 : f32
    %28 = vector.broadcast %cst_15 : f32 to vector<16x128xf32>
    %29 = arith.select %27, %16, %28 : vector<16x128xi1>, vector<16x128xf32>
    %cst_16 = arith.constant dense<0.000000e+00> : vector<16xf32>
    %30 = vector.multi_reduction <add>, %29, %cst_16 [1] : vector<16x128xf32> to vector<16xf32>
    %31 = vector.shape_cast %30 : vector<16xf32> to vector<16x1xf32>
    %32 = math.sqrt %22 : vector<16x1xf32>
    %33 = math.sqrt %31 : vector<16x1xf32>
    %34 = tpu.concatenate %32, %33 in 1 : vector<16x1xf32>, vector<16x1xf32> -> vector<16x2xf32>
    %c0_17 = arith.constant 0 : index
    %c64 = arith.constant 64 : index
    %35 = vector.load %arg6[%c0_17, %c64] : memref<16x128xf32, #tpu.memory_space<vmem>>, vector<16x2xf32>
    tpu.vector_store %arg6[%c0_17, %c64], %34 {strides = array<i32>} : memref<16x128xf32, #tpu.memory_space<vmem>>, vector<16x2xf32>,
    return
  }
  func.func @transform_0(%arg0: i32) -> (i32, i32) {
    %c0_i32 = arith.constant 0 : i32
    %c0_i32_0 = arith.constant 0 : i32
    return %arg0, %c0_i32 : i32, i32
  }
  func.func @transform_1(%arg0: i32) -> (i32, i32) {
    %c0_i32 = arith.constant 0 : i32
    %c0_i32_0 = arith.constant 0 : i32
    %c0_i32_1 = arith.constant 0 : i32
    return %c0_i32, %c0_i32_0 : i32, i32
  }
  func.func @transform_2(%arg0: i32) -> (i32, i32) {
    %c0_i32 = arith.constant 0 : i32
    %c0_i32_0 = arith.constant 0 : i32
    %c0_i32_1 = arith.constant 0 : i32
    return %c0_i32, %c0_i32_0 : i32, i32
  }
  func.func @transform_3(%arg0: i32) -> (i32, i32) {
    %c0_i32 = arith.constant 0 : i32
    %c0_i32_0 = arith.constant 0 : i32
    %c0_i32_1 = arith.constant 0 : i32
    return %c0_i32, %c0_i32_0 : i32, i32
  }
  func.func @transform_4(%arg0: i32) -> (i32, i32) {
    %c0_i32 = arith.constant 0 : i32
    %c0_i32_0 = arith.constant 0 : i32
    %c0_i32_1 = arith.constant 0 : i32
    return %c0_i32, %c0_i32_0 : i32, i32
  }
  func.func @transform_5(%arg0: i32) -> (i32, i32) {
    %c0_i32 = arith.constant 0 : i32
    %c0_i32_0 = arith.constant 0 : i32
    return %arg0, %c0_i32 : i32, i32
  }
}

</mosaic_0001>

<llo_original>
// kernel: encoder_forward_pallas.1
$region0: #{encoder_forward_pallas.1}
  #allocation0 [shape = 'u32[]', space=smem, size = 0x4, offset = 0x4, fixed_abs, tag = 'smem constant byte address 0x4 - core index']
  #allocation1 [shape = 'u32[144,128]{1,0:T(1,128)}', space=vmem, size = 0x12000, scoped, tag = 'internal scratch']
  %s0 = inlined_call_operand.vmem [shape: f32[16,32], index: 0, kind: input, shape index: {}]
  %s1 = inlined_call_operand.vmem [shape: bf16[32,64], index: 1, kind: input, shape index: {}]
  %s2 = inlined_call_operand.vmem [shape: f32[1,64], index: 2, kind: input, shape index: {}]
  %s3 = inlined_call_operand.hbm [shape: bf16[64,128], index: 3, kind: input, shape index: {}]
  %s4 = inlined_call_operand.vmem [shape: f32[1,128], index: 4, kind: input, shape index: {}]
  %s5 = inlined_call_operand.vmem [shape: f32[16,128], index: 5, kind: output, shape index: {}]
  %s6 = sld [smem:[#allocation0]]
  $region34: #{encoder_forward_pallas.1} parent=0
    _
  %s8 = ssub.s32 1, %s6
  %s9 = scalar_select 0, %s8, %s6
  $region1: #{encoder_forward_pallas.1} parent=0
    #allocation2 [shape = 'u8[16384]{0}', space=vmem, size = 0x4000, scoped, tag = 'input window, operand 3, single buffered']
    #allocation3 [shape = 's32[1]{0}', space=sflag, size = 0x4, scoped, tag = 'scoped memory for encoder_forward_pallas.1']
    %10 = vsyncpa [#allocation3], 0
    // Predicated region
    $region2: #{encoder_forward_pallas.1} parent=1 // pred_check
      _
    $region3: #{encoder_forward_pallas.1} parent=1 // pred_check_branch
      %12 = sbr.rel (0) target = $region5
    $region4: #{encoder_forward_pallas.1} parent=1 // pred_region
      _
    $region5: #{encoder_forward_pallas.1} parent=1 // pred_fallthru
      _
    // Predicated region
    $region6: #{encoder_forward_pallas.1} parent=1 // pred_check
      _
    $region7: #{encoder_forward_pallas.1} parent=1 // pred_check_branch
      %14 = sbr.rel (0) target = $region9
    $region8: #{encoder_forward_pallas.1} parent=1 // pred_region
      _
    $region9: #{encoder_forward_pallas.1} parent=1 // pred_fallthru
      _
    // Predicated region
    $region10: #{encoder_forward_pallas.1} parent=1 // pred_check
      _
    $region11: #{encoder_forward_pallas.1} parent=1 // pred_check_branch
      %16 = sbr.rel (0) target = $region13
    $region12: #{encoder_forward_pallas.1} parent=1 // pred_region
      _
    $region13: #{encoder_forward_pallas.1} parent=1 // pred_fallthru
      _
    // Predicated region
    $region14: #{encoder_forward_pallas.1} parent=1 // pred_check
      _
    $region15: #{encoder_forward_pallas.1} parent=1 // pred_check_branch
      %18 = sbr.rel (0) target = $region17
    $region16: #{encoder_forward_pallas.1} parent=1 // pred_region
      %s20 = ssub.s32 512, 512
      %21 = vsyncadd [#allocation3], %s20
      %s22 = sshll.u32 [#allocation2], 4
      %s23 = int_to_ptr.vmem [resolvable:$true] %s22
      %28 = dma.hbm_to_vmem [thread:$0]  %s3, 512, %s23, [#allocation3], 64, 64, 4
    $region17: #{encoder_forward_pallas.1} parent=1 // pred_fallthru
      _
    // Predicated region
    $region18: #{encoder_forward_pallas.1} parent=1 // pred_check
      _
    $region19: #{encoder_forward_pallas.1} parent=1 // pred_check_branch
      %30 = sbr.rel (0) target = $region21
    $region20: #{encoder_forward_pallas.1} parent=1 // pred_region
      _
    $region21: #{encoder_forward_pallas.1} parent=1 // pred_fallthru
      _
    // Predicated region
    $region22: #{encoder_forward_pallas.1} parent=1 // pred_check
      _
    $region23: #{encoder_forward_pallas.1} parent=1 // pred_check_branch
      %32 = sbr.rel (0) target = $region25
    $region24: #{encoder_forward_pallas.1} parent=1 // pred_region
      %33 = dma.done [#allocation3], 512
    $region25: #{encoder_forward_pallas.1} parent=1 // pred_fallthru
      _
    %v35 = vld [vmem:[%s0] sm:$0xff]
    %v36 = vld [vmem:[%s0 + $0x8] sm:$0xff]
    %v37 = vpack.c.bf16 %v36, %v35
    %v38 = vld [vmem:[%s1] sm:$0xf]
    %v39 = vld [vmem:[%s1 + $0x4] sm:$0xf]
    %v40 = vld [vmem:[%s1 + $0x8] sm:$0xf]
    %v41 = vld [vmem:[%s1 + $0xc] sm:$0xf]
    %v42 = vld [vmem:[%s2] sm:$0x1]
    %v44 = vlaneseq
    %v45 = vshrl.u32 %v44, 7
    %v46 = vsub.s32 0, %v45
    %v47 = vrot.slane %v42, %v46
    %v53 = vunpack.c.l.b16 %v38
    %v54 = vunpack.c.l.b16 %v39
    %v55 = vunpack.c.l.b16 %v40
    %v56 = vunpack.c.l.b16 %v41
    %v57 = vpack.c.b16 %v54, %v53
    %v58 = vpack.c.b16 %v56, %v55
    %vm61 = vcmask 261120
    %v63 = vsel %vm61, %v37, 0
    %65 = vmatprep.subr.bf16.mxu0 0
    %66 = vmatpush1.bf16.msra.mxu0 0
    %67 = vmatprep.subr.bf16.mxu0 0
    %68 = vmatpush1.bf16.msra.mxu0 0
    %69 = vmatprep.subr.bf16.mxu0 0
    %70 = vmatpush1.bf16.msra.mxu0 0
    %71 = vmatprep.subr.bf16.mxu0 0
    %72 = vmatpush1.bf16.msra.mxu0 0
    %73 = vmatprep.subr.bf16.mxu0 0
    %74 = vmatpush1.bf16.msra.mxu0 0
    %75 = vmatprep.subr.bf16.mxu0 0
    %76 = vmatpush1.bf16.msra.mxu0 0
    %77 = vmatprep.subr.bf16.mxu0 0
    %78 = vmatpush1.bf16.msra.mxu0 %v58
    %79 = vmatprep.subr.bf16.mxu0 0
    %80 = vmatpush1.bf16.msra.mxu0 %v57
    %81 = vmatprep.subr.bf16.mxu0 0
    %82 = vmatpush2.bf16.msra.mxu0 0
    %83 = vmatprep.subr.bf16.mxu0 0
    %84 = vmatpush2.bf16.msra.mxu0 0
    %85 = vmatprep.subr.bf16.mxu0 0
    %86 = vmatpush2.bf16.msra.mxu0 0
    %87 = vmatprep.subr.bf16.mxu0 0
    %88 = vmatpush2.bf16.msra.mxu0 0
    %89 = vmatprep.subr.bf16.mxu0 0
    %90 = vmatpush2.bf16.msra.mxu0 0
    %91 = vmatprep.subr.bf16.mxu0 0
    %92 = vmatpush2.bf16.msra.mxu0 0
    %93 = vmatprep.subr.bf16.mxu0 0
    %94 = vmatpush2.bf16.msra.mxu0 0
    %95 = vmatprep.subr.bf16.mxu0 0
    %96 = vmatpush2.bf16.msra.mxu0 0
    %97 = vmatprep.mubr.bf16.mxu0 0
    %98 = vmatmul.mubr.bf16.gmra.mxu0 %v63
    %v99 = vpop.f32.mrf.mxu0
    %v100 = vadd.f32 %v47, %v99
    %v101 = vpop.f32.mrf.mxu0
    %v102 = vpop.f32.mrf.mxu0
    %v103 = vadd.f32 %v47, %v102
    %v104 = vpop.f32.mrf.mxu0
    %105 = vdwg.mxu0
    %v106 = vtanh.pop %v100
    %v107 = vtanh.pop %v103
    %v108 = vpack.c.bf16 %v107, %v106
    %v109 = vld [vmem:[#allocation2] sm:$0xf]
    %v110 = vld [vmem:[#allocation2 + $0x4] sm:$0xf]
    %v111 = vld [vmem:[#allocation2 + $0x8] sm:$0xf]
    %v112 = vld [vmem:[#allocation2 + $0xc] sm:$0xf]
    %v113 = vld [vmem:[#allocation2 + $0x10] sm:$0xf]
    %v114 = vld [vmem:[#allocation2 + $0x14] sm:$0xf]
    %v115 = vld [vmem:[#allocation2 + $0x18] sm:$0xf]
    %v116 = vld [vmem:[#allocation2 + $0x1c] sm:$0xf]
    %v117 = vld [vmem:[%s4] sm:$0x1]
    %v119 = vlaneseq
    %v120 = vshrl.u32 %v119, 7
    %v121 = vsub.s32 0, %v120
    %v122 = vrot.slane %v117, %v121
    %v132 = vunpack.c.l.b16 %v109
    %v133 = vunpack.c.l.b16 %v110
    %v134 = vunpack.c.l.b16 %v111
    %v135 = vunpack.c.l.b16 %v112
    %v136 = vunpack.c.l.b16 %v113
    %v137 = vunpack.c.l.b16 %v114
    %v138 = vunpack.c.l.b16 %v115
    %v139 = vunpack.c.l.b16 %v116
    %v140 = vpack.c.b16 %v133, %v132
    %v141 = vpack.c.b16 %v135, %v134
    %v142 = vpack.c.b16 %v137, %v136
    %v143 = vpack.c.b16 %v139, %v138
    %vm148 = vcmask 523264
    %v150 = vsel %vm148, %v108, 0
    %152 = vmatprep.subr.bf16.mxu0 0
    %153 = vmatpush1.bf16.msra.mxu0 0
    %154 = vmatprep.subr.bf16.mxu0 0
    %155 = vmatpush1.bf16.msra.mxu0 0
    %156 = vmatprep.subr.bf16.mxu0 0
    %157 = vmatpush1.bf16.msra.mxu0 0
    %158 = vmatprep.subr.bf16.mxu0 0
    %159 = vmatpush1.bf16.msra.mxu0 0
    %160 = vmatprep.subr.bf16.mxu0 0
    %161 = vmatpush1.bf16.msra.mxu0 %v143
    %162 = vmatprep.subr.bf16.mxu0 0
    %163 = vmatpush1.bf16.msra.mxu0 %v142
    %164 = vmatprep.subr.bf16.mxu0 0
    %165 = vmatpush1.bf16.msra.mxu0 %v141
    %166 = vmatprep.subr.bf16.mxu0 0
    %167 = vmatpush1.bf16.msra.mxu0 %v140
    %168 = vmatprep.subr.bf16.mxu0 0
    %169 = vmatpush2.bf16.msra.mxu0 0
    %170 = vmatprep.subr.bf16.mxu0 0
    %171 = vmatpush2.bf16.msra.mxu0 0
    %172 = vmatprep.subr.bf16.mxu0 0
    %173 = vmatpush2.bf16.msra.mxu0 0
    %174 = vmatprep.subr.bf16.mxu0 0
    %175 = vmatpush2.bf16.msra.mxu0 0
    %176 = vmatprep.subr.bf16.mxu0 0
    %177 = vmatpush2.bf16.msra.mxu0 0
    %178 = vmatprep.subr.bf16.mxu0 0
    %179 = vmatpush2.bf16.msra.mxu0 0
    %180 = vmatprep.subr.bf16.mxu0 0
    %181 = vmatpush2.bf16.msra.mxu0 0
    %182 = vmatprep.subr.bf16.mxu0 0
    %183 = vmatpush2.bf16.msra.mxu0 0
    %184 = vmatprep.mubr.bf16.mxu0 0
    %185 = vmatmul.mubr.bf16.gmra.mxu0 %v150
    %v186 = vpop.f32.mrf.mxu0
    %v187 = vadd.f32 %v122, %v186
    %v188 = vpop.f32.mrf.mxu0
    %v189 = vpop.f32.mrf.mxu0
    %v190 = vadd.f32 %v122, %v189
    %v191 = vpop.f32.mrf.mxu0
    %192 = vdwg.mxu0
    %193 = vst [vmem:[%s5] sm:$0xff] %v187
    %194 = vst [vmem:[%s5 + $0x8] sm:$0xff] %v190
    %v195 = vlaneseq
    %v196 = vand.u32 %v195, 127
    %v197 = vmul.f32 %v187, %v187
    %v198 = vmul.f32 %v190, %v190
    %vm199 = vcmp.lt.s32.totalorder %v196, 32
    %v200 = vsel %vm199, %v197, 0.0
    %v201 = vsel %vm199, %v198, 0.0
    %202 = vadd.xlane.f32.xlu0 %v200
    %v203 = vpop.xlane.xlu0 %202
    %204 = vadd.xlane.f32.xlu0 %v201
    %v205 = vpop.xlane.xlu0 %204
    %vm206 = vcmp.ge.s32.totalorder %v196, 32
    %vm207 = vcmp.lt.s32.totalorder %v196, 64
    %vm208 = vmand %vm206, %vm207
    %v209 = vsel %vm208, %v197, 0.0
    %v210 = vsel %vm208, %v198, 0.0
    %211 = vadd.xlane.f32.xlu0 %v209
    %v212 = vpop.xlane.xlu0 %211
    %213 = vadd.xlane.f32.xlu0 %v210
    %v214 = vpop.xlane.xlu0 %213
    %v215 = vrsqrt.pop %v203
    %v216 = vmul.f32 %v203, %v215
    %vm217 = vcmp.eq.f32.partialorder %v203, inf
    %v218 = vsel %vm217, %v203, %v216
    %vm219 = vcmp.eq.f32.partialorder %v203, 0.0
    %v220 = vand.u32 %v203, 2147483648
    %v221 = vsel %vm219, %v220, %v218
    %v222 = vrsqrt.pop %v205
    %v223 = vmul.f32 %v205, %v222
    %vm224 = vcmp.eq.f32.partialorder %v205, inf
    %v225 = vsel %vm224, %v205, %v223
    %vm226 = vcmp.eq.f32.partialorder %v205, 0.0
    %v227 = vand.u32 %v205, 2147483648
    %v228 = vsel %vm226, %v227, %v225
    %v229 = vrsqrt.pop %v212
    %v230 = vmul.f32 %v212, %v229
    %vm231 = vcmp.eq.f32.partialorder %v212, inf
    %v232 = vsel %vm231, %v212, %v230
    %vm233 = vcmp.eq.f32.partialorder %v212, 0.0
    %v234 = vand.u32 %v212, 2147483648
    %v235 = vsel %vm233, %v234, %v232
    %v236 = vrsqrt.pop %v214
    %v237 = vmul.f32 %v214, %v236
    %vm238 = vcmp.eq.f32.partialorder %v214, inf
    %v239 = vsel %vm238, %v214, %v237
    %vm240 = vcmp.eq.f32.partialorder %v214, 0.0
    %v241 = vand.u32 %v214, 2147483648
    %v242 = vsel %vm240, %v241, %v239
    %vm243 = vcmask 7168
    %v244 = vsel %vm243, %v221, %v235
    %v245 = vsel %vm243, %v228, %v242
    %248 = vrot.lane.b32.xlu0 %v244, 64
    %v249 = vpop.permute.xlu0 %248
    %250 = vrot.lane.b32.xlu0 %v245, 64
    %v251 = vpop.permute.xlu0 %250
    %vm254 = vcmask 540160
    %255 = vst.msk [vmem:[%s5] sm:$0xff] %vm254, %v249
    %256 = vst.msk [vmem:[%s5 + $0x8] sm:$0xff] %vm254, %v251
    // Predicated region
    $region26: #{encoder_forward_pallas.1} parent=1 // pred_check
      _
    $region27: #{encoder_forward_pallas.1} parent=1 // pred_check_branch
      %258 = sbr.rel (0) target = $region29
    $region28: #{encoder_forward_pallas.1} parent=1 // pred_region
      _
    $region29: #{encoder_forward_pallas.1} parent=1 // pred_fallthru
      _
    // Predicated region
    $region30: #{encoder_forward_pallas.1} parent=1 // pred_check
      _
    $region31: #{encoder_forward_pallas.1} parent=1 // pred_check_branch
      %260 = sbr.rel (0) target = $region33
    $region32: #{encoder_forward_pallas.1} parent=1 // pred_region
      _
    $region33: #{encoder_forward_pallas.1} parent=1 // pred_fallthru
      _
    %261 = vsyncpa [#allocation3], 1

</llo_original>
